<compile_context>
chip_gen: v7x
topology: tpu7x:2x2x1
jax: 0.10.0
libtpu: 0.0.40
codegen_flags: <defaults>
</compile_context>

<pallas_src>
import functools
import math

import jax
import jax.numpy as jnp
from jax.experimental import pallas as pl
from jax.experimental.pallas import tpu as pltpu

_INV_SQRT2 = 1.0 / math.sqrt(2.0)
_SQRT_2_OVER_PI = math.sqrt(2.0 / math.pi)


def _round_up(x, m):
    return ((x + m - 1) // m) * m


def _cdiv(a, b):
    return (a + b - 1) // b


def _gelu(h, approx):
    if approx:
        # tanh form -> EUP slot; useful only when VALU-bound (small E).
        return 0.5 * h * (1.0 + jnp.tanh(_SQRT_2_OVER_PI * (h + 0.044715 * h * h * h)))
    # Exact erf form (torch.nn.GELU() default), evaluated in f32.
    return 0.5 * h * (1.0 + jax.lax.erf(h * _INV_SQRT2))


def _pick_n_sub(chunk):
    # Statically-unrolled sub-chunks of the hidden chunk: GELU (VPU) of
    # sub-chunk j overlaps the MXU pushes of sub-chunk j+1, and the live
    # (tm, sub) f32 intermediate stays small.
    for n in (4, 2):
        if chunk % (n * 128) == 0 and chunk // n >= 256:
            return n
    return 1


# ------------------------------- kernels -------------------------------------

def _mlp_kernel_resident(x_ref, w1_ref, b1_ref, w2_ref, b2_ref, o_ref, *,
                         n_sub, approx_gelu):
    # x:(tm,Ep) bf16  w1:(Ep,Mp) bf16  b1:(1,Mp) f32  w2:(Mp,Ep) bf16  b2:(1,Ep) f32
    x = x_ref[...]
    mp = w1_ref.shape[1]
    sub = mp // n_sub
    acc = jnp.zeros((x.shape[0], o_ref.shape[1]), jnp.float32)
    for j in range(n_sub):                      # statically unrolled
        sl = pl.ds(j * sub, sub)
        h = jnp.dot(x, w1_ref[:, sl], preferred_element_type=jnp.float32)
        h = _gelu(h + b1_ref[:, sl], approx_gelu)
        acc = acc + jnp.dot(h.astype(w2_ref.dtype), w2_ref[sl, :],
                            preferred_element_type=jnp.float32)
    o_ref[...] = (acc + b2_ref[...]).astype(o_ref.dtype)


def _mlp_kernel_chunked(x_ref, w1_ref, b1_ref, w2_ref, b2_ref, o_ref, *scratch,
                        n_sub, approx_gelu):
    # Hidden dim chunk on grid axis 1 ("arbitrary", last). For f32 outputs the
    # resident output tile is the accumulator; otherwise an f32 VMEM scratch.
    acc_ref = scratch[0] if scratch else o_ref
    k = pl.program_id(1)

    @pl.when(k == 0)
    def _():
        acc_ref[...] = jnp.zeros_like(acc_ref)

    x = x_ref[...]
    tk = w1_ref.shape[1]
    sub = tk // n_sub
    part = jnp.zeros((x.shape[0], o_ref.shape[1]), jnp.float32)
    for j in range(n_sub):                      # statically unrolled
        sl = pl.ds(j * sub, sub)
        h = jnp.dot(x, w1_ref[:, sl], preferred_element_type=jnp.float32)
        h = _gelu(h + b1_ref[:, sl], approx_gelu)
        part = part + jnp.dot(h.astype(w2_ref.dtype), w2_ref[sl, :],
                              preferred_element_type=jnp.float32)
    acc_ref[...] += part

    @pl.when(k == pl.num_programs(1) - 1)
    def _():
        if scratch:
            o_ref[...] = (acc_ref[...] + b2_ref[...]).astype(o_ref.dtype)
        else:
            o_ref[...] = o_ref[...] + b2_ref[...]


# ------------------------------- wrapper --------------------------------------

def _vmem_capacity_bytes():
    try:
        return int(pltpu.get_tpu_info().vmem_capacity_bytes)
    except Exception:
        return 64 * 1024 * 1024  # conservative default: v7x per-core VMEM


def _default_row_tile():
    # v5-class parts are roughly roofline-balanced at ~256-384 rows per weight
    # stream; v6e/v7x need ~768-1024 rows to be MXU-bound instead of HBM-bound.
    try:
        kind = jax.devices()[0].device_kind.lower()
    except Exception:
        kind = ""
    return 384 if "v5" in kind else 1024


def prepare_params(w1, b1, w2, b2, *, compute_dtype=jnp.bfloat16):
    """Pad + cast the MLP weights ONCE (outside the hot path) and reuse.

    w1: (E, M), b1: (M,), w2: (M, E), b2: (E,) -- stored pre-transposed vs
    torch.nn.Linear (kernel computes x @ W1, then h @ W2).
    """
    E, M = w1.shape
    assert w2.shape == (M, E) and b1.shape == (M,) and b2.shape == (E,)
    Ep, Mp = _round_up(E, 128), _round_up(M, 128)
    cdt = jnp.dtype(compute_dtype)
    # Zero padding is an exact no-op: padded hidden cols give h=0 -> GELU(0)=0,
    # and the matching W2 rows / output cols are zero.
    w1p = jnp.zeros((Ep, Mp), cdt).at[:E, :M].set(w1.astype(cdt))
    w2p = jnp.zeros((Mp, Ep), cdt).at[:M, :E].set(w2.astype(cdt))
    b1p = jnp.zeros((1, Mp), jnp.float32).at[0, :M].set(b1.astype(jnp.float32))
    b2p = jnp.zeros((1, Ep), jnp.float32).at[0, :E].set(b2.astype(jnp.float32))
    return dict(w1=w1p, b1=b1p, w2=w2p, b2=b2p, E=E, M=M, compute_dtype=cdt)


def mlp_block_3d(x, params, *, row_tile=None, hidden_tile=2048,
                 approx_gelu=False, _force_chunked=False):
    """Forward pass of MLPBlock3D: lin2(GELU(lin1(x))). x: (..., E)."""
    orig_shape = x.shape
    out_dtype = x.dtype
    E, M = params["E"], params["M"]
    cdt = params["compute_dtype"]
    w1p, b1p, w2p, b2p = params["w1"], params["b1"], params["w2"], params["b2"]
    Ep, Mp = w1p.shape
    assert orig_shape[-1] == E

    x2 = x.reshape(-1, E)
    N = x2.shape[0]

    cbytes = jnp.dtype(cdt).itemsize
    obytes = jnp.dtype(out_dtype).itemsize
    vmem_cap = _vmem_capacity_bytes()
    budget = int(0.85 * vmem_cap)

    # ---- row tile: big enough to amortize weight streaming, but keep >=2 row
    # tiles (megacore / both v7x TCs) when N allows; sublane-aligned.
    if row_tile is None:
        row_tile = _default_row_tile()
    tm = min(_round_up(row_tile, 16), _round_up(N, 16))
    if tm > 256 and _cdiv(N, tm) < 2:
        tm = max(256, _round_up(_cdiv(N, 2), 16))

    def interm_bytes(tm_):
        # f32 accumulator value + largest (tm, sub) f32 GELU intermediate that
        # the compiler may materialize in VMEM.
        return tm_ * Ep * 4 + tm_ * 512 * 4

    def resident_bytes(tm_):
        return (2 * Ep * Mp * cbytes + 2 * Mp * Ep * cbytes       # W1, W2
                + 2 * 8 * Mp * 4 + 2 * 8 * Ep * 4                 # b1, b2
                + 2 * tm_ * Ep * (cbytes + obytes)                 # x / out tiles
                + interm_bytes(tm_))

    def chunked_bytes(tm_, tk_, with_scratch):
        b = (2 * tm_ * Ep * cbytes                                 # x tile
             + 2 * Ep * tk_ * cbytes + 2 * tk_ * Ep * cbytes       # W1/W2 chunks
             + 2 * 8 * tk_ * 4 + 2 * 8 * Ep * 4                    # b1/b2
             + 2 * tm_ * Ep * obytes                               # out tile
             + interm_bytes(tm_))
        if with_scratch:
            b += tm_ * Ep * 4
        return b

    # ---- fast path: both weight matrices resident in VMEM for all row tiles.
    tm_res = tm
    while resident_bytes(tm_res) > budget and tm_res > 256:
        tm_res = max(256, _round_up(tm_res // 2, 16))
    use_resident = (not _force_chunked) and resident_bytes(tm_res) <= budget

    if use_resident:
        tm_sel, tk = tm_res, Mp
        use_scratch = False
        n_sub = _pick_n_sub(Mp)
        vmem_est = resident_bytes(tm_sel)
    else:
        use_scratch = jnp.dtype(out_dtype) != jnp.dtype(jnp.float32)
        hidden_tile = max(128, (int(hidden_tile) // 128) * 128)
        cand = [t for t in range(min(hidden_tile, Mp), 0, -128) if Mp % t == 0]
        tm_sel, tk = tm, None
        while tk is None:                       # tile-shrink fallback
            for t in cand:
                if chunked_bytes(tm_sel, t, use_scratch) <= budget:
                    tk = t
                    break
            if tk is None:
                if tm_sel > 128:
                    tm_sel = max(128, _round_up(tm_sel // 2, 16))
                else:
                    tk = cand[-1]               # last resort: smallest chunk
        n_sub = _pick_n_sub(tk)
        vmem_est = chunked_bytes(tm_sel, tk, use_scratch)

    Np = _round_up(N, tm_sel)

    # ---- pad / cast x only when actually needed (skip the copy otherwise).
    if (Np != N) or (Ep != E):
        xp = jnp.zeros((Np, Ep), cdt).at[:N, :E].set(x2.astype(cdt))
    else:
        xp = x2.astype(cdt)

    n_row_tiles = Np // tm_sel
    weight_bytes = 2 * Ep * Mp * cbytes
    cost = pl.CostEstimate(
        flops=4 * N * E * M,                    # two matmuls, 2*N*E*M each
        transcendentals=N * M,                  # erf/tanh per hidden activation
        bytes_accessed=int(Np * Ep * (cbytes + obytes)
                           + weight_bytes * (1 if use_resident else n_row_tiles)
                           + (Mp + Ep) * 4),
    )
    vmem_limit = int(min(max(1.2 * vmem_est, 32 * 1024 * 1024), 0.98 * vmem_cap))

    if use_resident:
        kernel = functools.partial(_mlp_kernel_resident, n_sub=n_sub,
                                   approx_gelu=approx_gelu)
        grid = (n_row_tiles,)
        in_specs = [
            pl.BlockSpec((tm_sel, Ep), lambda i: (i, 0)),   # x row tile
            pl.BlockSpec((Ep, Mp), lambda i: (0, 0)),       # W1 (resident)
            pl.BlockSpec((1, Mp), lambda i: (0, 0)),        # b1
            pl.BlockSpec((Mp, Ep), lambda i: (0, 0)),       # W2 (resident)
            pl.BlockSpec((1, Ep), lambda i: (0, 0)),        # b2
        ]
        out_specs = pl.BlockSpec((tm_sel, Ep), lambda i: (i, 0))
        scratch_shapes = []
        dim_sem = ("parallel",)
    else:
        kernel = functools.partial(_mlp_kernel_chunked, n_sub=n_sub,
                                   approx_gelu=approx_gelu)
        grid = (n_row_tiles, Mp // tk)
        in_specs = [
            pl.BlockSpec((tm_sel, Ep), lambda i, k: (i, 0)),  # x row tile
            pl.BlockSpec((Ep, tk), lambda i, k: (0, k)),      # W1 hidden chunk
            pl.BlockSpec((1, tk), lambda i, k: (0, k)),       # b1 chunk
            pl.BlockSpec((tk, Ep), lambda i, k: (k, 0)),      # W2 hidden chunk
            pl.BlockSpec((1, Ep), lambda i, k: (0, 0)),       # b2
        ]
        out_specs = pl.BlockSpec((tm_sel, Ep), lambda i, k: (i, 0))
        scratch_shapes = ([pltpu.VMEM((tm_sel, Ep), jnp.float32)]
                          if use_scratch else [])
        dim_sem = ("parallel", "arbitrary")

    out = pl.pallas_call(
        kernel,
        out_shape=jax.ShapeDtypeStruct((Np, Ep), out_dtype),
        grid_spec=pltpu.PrefetchScalarGridSpec(
            num_scalar_prefetch=0,
            grid=grid,
            in_specs=in_specs,
            out_specs=out_specs,
            scratch_shapes=scratch_shapes,
        ),
        compiler_params=pltpu.CompilerParams(
            dimension_semantics=dim_sem,
            vmem_limit_bytes=vmem_limit),
        cost_estimate=cost,
    )(xp, w1p, b1p, w2p, b2p)

    if (Np != N) or (Ep != E):
        out = out[:N, :E]
    return out.reshape(orig_shape)


# ------------------------------ reference / init ------------------------------

def init_params(key, embedding_dim, mlp_dim, dtype=jnp.float32):
    """nn.Linear-style init (uniform +-1/sqrt(fan_in)); weights stored transposed."""
    k1, k2, k3, k4 = jax.random.split(key, 4)
    bound1 = 1.0 / math.sqrt(embedding_dim)
    bound2 = 1.0 / math.sqrt(mlp_dim)
    w1 = jax.random.uniform(k1, (embedding_dim, mlp_dim), dtype, -bound1, bound1)
    b1 = jax.random.uniform(k2, (mlp_dim,), dtype, -bound1, bound1)
    w2 = jax.random.uniform(k3, (mlp_dim, embedding_dim), dtype, -bound2, bound2)
    b2 = jax.random.uniform(k4, (embedding_dim,), dtype, -bound2, bound2)
    return w1, b1, w2, b2


def _reference(x, w1, b1, w2, b2):
    h = x @ w1 + b1
    h = 0.5 * h * (1.0 + jax.lax.erf(h * _INV_SQRT2))
    return h @ w2 + b2


if __name__ == "__main__":
    key = jax.random.PRNGKey(0)
    kx, kp, kx2, kp2 = jax.random.split(key, 4)

    # --- primary test: weights-resident fast path, f32 activations -----------
    batch, seq, embedding_dim, mlp_dim = 2, 8, 32, 64
    x = jax.random.normal(kx, (batch, seq, embedding_dim), jnp.float32)
    w1, b1, w2, b2 = init_params(kp, embedding_dim, mlp_dim)
    params = prepare_params(w1, b1, w2, b2)

    out = jax.block_until_ready(mlp_block_3d(x, params))
    ref = _reference(x.reshape(-1, embedding_dim), w1, b1, w2, b2).reshape(x.shape)
    assert out.shape == x.shape and out.dtype == x.dtype
    # bf16 MXU inputs with f32 accumulation -> bf16-level tolerance.
    assert jnp.allclose(out, ref, atol=2e-2, rtol=2e-2), "resident path mismatch"

    # --- chunked path (hidden dim on grid), f32 in-place output accumulator ---
    batch2, seq2, e2, m2 = 2, 24, 64, 256
    x2 = jax.random.normal(kx2, (batch2, seq2, e2), jnp.float32)
    w1b, b1b, w2b, b2b = init_params(kp2, e2, m2)
    params2 = prepare_params(w1b, b1b, w2b, b2b)

    out2 = jax.block_until_ready(
        mlp_block_3d(x2, params2, hidden_tile=128, _force_chunked=True))
    ref2 = _reference(x2.reshape(-1, e2), w1b, b1b, w2b, b2b).reshape(x2.shape)
    assert jnp.allclose(out2, ref2, atol=2e-2, rtol=2e-2), "chunked path mismatch"

    # --- chunked path with bf16 output (f32 VMEM scratch accumulator) --------
    x3 = x2.astype(jnp.bfloat16)
    out3 = jax.block_until_ready(
        mlp_block_3d(x3, params2, hidden_tile=128, _force_chunked=True))
    ref3 = _reference(x3.astype(jnp.float32).reshape(-1, e2),
                      w1b, b1b, w2b, b2b).reshape(x3.shape)
    assert out3.dtype == jnp.bfloat16
    assert jnp.allclose(out3.astype(jnp.float32), ref3, atol=5e-2, rtol=5e-2), \
        "chunked bf16 path mismatch"

    print("KERNEL_OK")
</pallas_src>

<mosaic_0001>
module attributes {stable_mosaic.version = 11 : i64} {
  func.func @_mlp_kernel_resident(%arg0: i32, %arg1: memref<16x128xbf16, #tpu.memory_space<vmem>>, %arg2: memref<128x128xbf16, #tpu.memory_space<vmem>>, %arg3: memref<1x128xf32, #tpu.memory_space<vmem>>, %arg4: memref<128x128xbf16, #tpu.memory_space<vmem>>, %arg5: memref<1x128xf32, #tpu.memory_space<vmem>>, %arg6: memref<16x128xf32, #tpu.memory_space<vmem>>) attributes {dimension_semantics = [#tpu.dimension_semantics<parallel>], iteration_bounds = array<i64: 1>, scalar_prefetch = 0 : i64, scratch_operands = 0 : i64, tpu.core_type = #tpu.core_type<tc>, window_params = [{transform_indices = @transform_0, window_bounds = array<i64: 16, 128>}, {pipeline_mode = #tpu.pipeline_mode<synchronous>, transform_indices = @transform_1, window_bounds = array<i64: 128, 128>}, {pipeline_mode = #tpu.pipeline_mode<synchronous>, transform_indices = @transform_2, window_bounds = array<i64: 1, 128>}, {pipeline_mode = #tpu.pipeline_mode<synchronous>, transform_indices = @transform_3, window_bounds = array<i64: 128, 128>}, {pipeline_mode = #tpu.pipeline_mode<synchronous>, transform_indices = @transform_4, window_bounds = array<i64: 1, 128>}, {transform_indices = @transform_5, window_bounds = array<i64: 16, 128>}]} {
    %c0 = arith.constant 0 : index
    %c0_0 = arith.constant 0 : index
    %0 = vector.load %arg1[%c0, %c0_0] : memref<16x128xbf16, #tpu.memory_space<vmem>>, vector<16x128xbf16>
    %cst = arith.constant 0.000000e+00 : f32
    %1 = vector.broadcast %cst : f32 to vector<16x128xf32>
    %c0_1 = arith.constant 0 : index
    %c0_2 = arith.constant 0 : index
    %2 = vector.load %arg2[%c0_1, %c0_2] : memref<128x128xbf16, #tpu.memory_space<vmem>>, vector<128x128xbf16>
    %cst_3 = arith.constant dense<0.000000e+00> : vector<16x128xf32>
    %3 = tpu.matmul %0, %2, %cst_3 {dimension_numbers = #tpu.dot_dimension_numbers<[1], [0], [0], [1], [0, 0, 1, 1], [], []>} : vector<16x128xbf16>, vector<128x128xbf16>, vector<16x128xf32> -> vector<16x128xf32>
    %c0_4 = arith.constant 0 : index
    %c0_5 = arith.constant 0 : index
    %4 = vector.load %arg3[%c0_4, %c0_5] : memref<1x128xf32, #tpu.memory_space<vmem>>, vector<1x128xf32>
    %5 = vector.broadcast %4 : vector<1x128xf32> to vector<16x128xf32>
    %6 = arith.addf %3, %5 : vector<16x128xf32>
    %cst_6 = arith.constant 5.000000e-01 : f32
    %7 = vector.broadcast %cst_6 : f32 to vector<16x128xf32>
    %8 = arith.mulf %7, %6 : vector<16x128xf32>
    %cst_7 = arith.constant 0.707106769 : f32
    %9 = vector.broadcast %cst_7 : f32 to vector<16x128xf32>
    %10 = arith.mulf %6, %9 : vector<16x128xf32>
    %11 = math.erf %10 : vector<16x128xf32>
    %cst_8 = arith.constant 1.000000e+00 : f32
    %12 = vector.broadcast %cst_8 : f32 to vector<16x128xf32>
    %13 = arith.addf %12, %11 : vector<16x128xf32>
    %14 = arith.mulf %8, %13 : vector<16x128xf32>
    %15 = arith.truncf %14 : vector<16x128xf32> to vector<16x128xbf16>
    %c0_9 = arith.constant 0 : index
    %c0_10 = arith.constant 0 : index
    %16 = vector.load %arg4[%c0_9, %c0_10] : memref<128x128xbf16, #tpu.memory_space<vmem>>, vector<128x128xbf16>
    %cst_11 = arith.constant dense<0.000000e+00> : vector<16x128xf32>
    %17 = tpu.matmul %15, %16, %cst_11 {dimension_numbers = #tpu.dot_dimension_numbers<[1], [0], [0], [1], [0, 0, 1, 1], [], []>} : vector<16x128xbf16>, vector<128x128xbf16>, vector<16x128xf32> -> vector<16x128xf32>
    %18 = arith.addf %1, %17 : vector<16x128xf32>
    %c0_12 = arith.constant 0 : index
    %c0_13 = arith.constant 0 : index
    %19 = vector.load %arg5[%c0_12, %c0_13] : memref<1x128xf32, #tpu.memory_space<vmem>>, vector<1x128xf32>
    %20 = vector.broadcast %19 : vector<1x128xf32> to vector<16x128xf32>
    %21 = arith.addf %18, %20 : vector<16x128xf32>
    %c0_14 = arith.constant 0 : index
    %c0_15 = arith.constant 0 : index
    %22 = vector.load %arg6[%c0_14, %c0_15] : memref<16x128xf32, #tpu.memory_space<vmem>>, vector<16x128xf32>
    tpu.vector_store %arg6[%c0_14, %c0_15], %21 {strides = array<i32>} : memref<16x128xf32, #tpu.memory_space<vmem>>, vector<16x128xf32>,
    return
  }
  func.func @transform_0(%arg0: i32) -> (i32, i32) {
    %c0_i32 = arith.constant 0 : i32
    %c0_i32_0 = arith.constant 0 : i32
    return %arg0, %c0_i32 : i32, i32
  }
  func.func @transform_1(%arg0: i32) -> (i32, i32) {
    %c0_i32 = arith.constant 0 : i32
    %c0_i32_0 = arith.constant 0 : i32
    %c0_i32_1 = arith.constant 0 : i32
    return %c0_i32, %c0_i32_0 : i32, i32
  }
  func.func @transform_2(%arg0: i32) -> (i32, i32) {
    %c0_i32 = arith.constant 0 : i32
    %c0_i32_0 = arith.constant 0 : i32
    %c0_i32_1 = arith.constant 0 : i32
    return %c0_i32, %c0_i32_0 : i32, i32
  }
  func.func @transform_3(%arg0: i32) -> (i32, i32) {
    %c0_i32 = arith.constant 0 : i32
    %c0_i32_0 = arith.constant 0 : i32
    %c0_i32_1 = arith.constant 0 : i32
    return %c0_i32, %c0_i32_0 : i32, i32
  }
  func.func @transform_4(%arg0: i32) -> (i32, i32) {
    %c0_i32 = arith.constant 0 : i32
    %c0_i32_0 = arith.constant 0 : i32
    %c0_i32_1 = arith.constant 0 : i32
    return %c0_i32, %c0_i32_0 : i32, i32
  }
  func.func @transform_5(%arg0: i32) -> (i32, i32) {
    %c0_i32 = arith.constant 0 : i32
    %c0_i32_0 = arith.constant 0 : i32
    return %arg0, %c0_i32 : i32, i32
  }
}

</mosaic_0001>

<llo_original>
// kernel: tpu_custom_call.1
$region0: #{tpu_custom_call.1}
  #allocation0 [shape = 'u32[]', space=smem, size = 0x4, offset = 0x4, fixed_abs, tag = 'smem constant byte address 0x4 - core index']
  #allocation1 [shape = 'u32[144,128]{1,0:T(1,128)}', space=vmem, size = 0x12000, scoped, tag = 'internal scratch']
  %s0 = inlined_call_operand.hbm [shape: bf16[16,128], index: 0, kind: input, shape index: {}]
  %s1 = inlined_call_operand.hbm [shape: bf16[128,128], index: 1, kind: input, shape index: {}]
  %s2 = inlined_call_operand.vmem [shape: f32[1,128], index: 2, kind: input, shape index: {}]
  %s3 = inlined_call_operand.hbm [shape: bf16[128,128], index: 3, kind: input, shape index: {}]
  %s4 = inlined_call_operand.vmem [shape: f32[1,128], index: 4, kind: input, shape index: {}]
  %s5 = inlined_call_operand.hbm [shape: f32[16,128], index: 5, kind: output, shape index: {}]
  %s6 = sld [smem:[#allocation0]]
  $region42: #{tpu_custom_call.1} parent=0
    _
  %s8 = ssub.s32 1, %s6
  %s9 = scalar_select 0, %s8, %s6
  $region1: #{tpu_custom_call.1} parent=0
    #allocation2 [shape = 'u8[4096]{0}', space=vmem, size = 0x1000, scoped, tag = 'input window, operand 0, single buffered']
    #allocation3 [shape = 's32[1]{0}', space=sflag, size = 0x4, scoped, tag = 'scoped memory for tpu_custom_call.1']
    #allocation4 [shape = 's32[1]{0}', space=sflag, size = 0x4, scoped, tag = 'scoped memory for tpu_custom_call.1']
    #allocation5 [shape = 'u8[32768]{0}', space=vmem, size = 0x8000, scoped, tag = 'input window, operand 1, single buffered']
    #allocation6 [shape = 's32[1]{0}', space=sflag, size = 0x4, scoped, tag = 'scoped memory for tpu_custom_call.1']
    #allocation7 [shape = 'u8[32768]{0}', space=vmem, size = 0x8000, scoped, tag = 'input window, operand 3, single buffered']
    #allocation8 [shape = 'u8[8192]{0}', space=vmem, size = 0x2000, scoped, tag = 'output window, operand 0, single buffered']
    %10 = vsyncpa [#allocation3], 0
    %11 = vsyncpa [#allocation6], 0
    %12 = vsyncpa [#allocation4], 0
    // Predicated region
    $region2: #{tpu_custom_call.1} parent=1 // pred_check
      _
    $region3: #{tpu_custom_call.1} parent=1 // pred_check_branch
      %14 = sbr.rel (0) target = $region5
    $region4: #{tpu_custom_call.1} parent=1 // pred_region
      %s16 = ssub.s32 128, 128
      %17 = vsyncadd [#allocation3], %s16
      %s18 = sshll.u32 [#allocation2], 4
      %s19 = int_to_ptr.vmem [resolvable:$true] %s18
      %24 = dma.hbm_to_vmem [thread:$0]  %s0, 128, %s19, [#allocation3], 64, 64, 4
    $region5: #{tpu_custom_call.1} parent=1 // pred_fallthru
      _
    // Predicated region
    $region6: #{tpu_custom_call.1} parent=1 // pred_check
      _
    $region7: #{tpu_custom_call.1} parent=1 // pred_check_branch
      %26 = sbr.rel (0) target = $region9
    $region8: #{tpu_custom_call.1} parent=1 // pred_region
      %s28 = ssub.s32 1024, 1024
      %29 = vsyncadd [#allocation6], %s28
      %s30 = sshll.u32 [#allocation5], 4
      %s31 = int_to_ptr.vmem [resolvable:$true] %s30
      %36 = dma.hbm_to_vmem [thread:$0]  %s1, 1024, %s31, [#allocation6], 64, 64, 4
    $region9: #{tpu_custom_call.1} parent=1 // pred_fallthru
      _
    // Predicated region
    $region10: #{tpu_custom_call.1} parent=1 // pred_check
      _
    $region11: #{tpu_custom_call.1} parent=1 // pred_check_branch
      %38 = sbr.rel (0) target = $region13
    $region12: #{tpu_custom_call.1} parent=1 // pred_region
      _
    $region13: #{tpu_custom_call.1} parent=1 // pred_fallthru
      _
    // Predicated region
    $region14: #{tpu_custom_call.1} parent=1 // pred_check
      _
    $region15: #{tpu_custom_call.1} parent=1 // pred_check_branch
      %40 = sbr.rel (0) target = $region17
    $region16: #{tpu_custom_call.1} parent=1 // pred_region
      %s42 = ssub.s32 1024, 1024
      %43 = vsyncadd [#allocation6], %s42
      %s44 = sshll.u32 [#allocation7], 4
      %s45 = int_to_ptr.vmem [resolvable:$true] %s44
      %50 = dma.hbm_to_vmem [thread:$0]  %s3, 1024, %s45, [#allocation6], 64, 64, 4
    $region17: #{tpu_custom_call.1} parent=1 // pred_fallthru
      _
    // Predicated region
    $region18: #{tpu_custom_call.1} parent=1 // pred_check
      _
    $region19: #{tpu_custom_call.1} parent=1 // pred_check_branch
      %52 = sbr.rel (0) target = $region21
    $region20: #{tpu_custom_call.1} parent=1 // pred_region
      _
    $region21: #{tpu_custom_call.1} parent=1 // pred_fallthru
      _
    // Predicated region
    $region22: #{tpu_custom_call.1} parent=1 // pred_check
      _
    $region23: #{tpu_custom_call.1} parent=1 // pred_check_branch
      %54 = sbr.rel (0) target = $region25
    $region24: #{tpu_custom_call.1} parent=1 // pred_region
      %55 = dma.done [#allocation3], 128
    $region25: #{tpu_custom_call.1} parent=1 // pred_fallthru
      _
    // Predicated region
    $region26: #{tpu_custom_call.1} parent=1 // pred_check
      _
    $region27: #{tpu_custom_call.1} parent=1 // pred_check_branch
      %57 = sbr.rel (0) target = $region29
    $region28: #{tpu_custom_call.1} parent=1 // pred_region
      %58 = dma.done [#allocation6], 1024
    $region29: #{tpu_custom_call.1} parent=1 // pred_fallthru
      _
    // Predicated region
    $region30: #{tpu_custom_call.1} parent=1 // pred_check
      _
    $region31: #{tpu_custom_call.1} parent=1 // pred_check_branch
      %60 = sbr.rel (0) target = $region33
    $region32: #{tpu_custom_call.1} parent=1 // pred_region
      %61 = dma.done [#allocation6], 1024
    $region33: #{tpu_custom_call.1} parent=1 // pred_fallthru
      _
    %v63 = vld [vmem:[#allocation2] sm:$0xf]
    %v64 = vld [vmem:[#allocation2 + $0x4] sm:$0xf]
    %v65 = vld [vmem:[#allocation5] sm:$0xf]
    %v66 = vld [vmem:[#allocation5 + $0x4] sm:$0xf]
    %v67 = vld [vmem:[#allocation5 + $0x8] sm:$0xf]
    %v68 = vld [vmem:[#allocation5 + $0xc] sm:$0xf]
    %v69 = vld [vmem:[#allocation5 + $0x10] sm:$0xf]
    %v70 = vld [vmem:[#allocation5 + $0x14] sm:$0xf]
    %v71 = vld [vmem:[#allocation5 + $0x18] sm:$0xf]
    %v72 = vld [vmem:[#allocation5 + $0x1c] sm:$0xf]
    %v73 = vld [vmem:[#allocation5 + $0x20] sm:$0xf]
    %v74 = vld [vmem:[#allocation5 + $0x24] sm:$0xf]
    %v75 = vld [vmem:[#allocation5 + $0x28] sm:$0xf]
    %v76 = vld [vmem:[#allocation5 + $0x2c] sm:$0xf]
    %v77 = vld [vmem:[#allocation5 + $0x30] sm:$0xf]
    %v78 = vld [vmem:[#allocation5 + $0x34] sm:$0xf]
    %v79 = vld [vmem:[#allocation5 + $0x38] sm:$0xf]
    %v80 = vld [vmem:[#allocation5 + $0x3c] sm:$0xf]
    %v81 = vld [vmem:[%s2] sm:$0x1]
    %v83 = vlaneseq
    %v84 = vshrl.u32 %v83, 7
    %v85 = vsub.s32 0, %v84
    %v86 = vrot.slane %v81, %v85
    %v90 = vunpack.c.l.b16 %v63
    %v91 = vunpack.c.l.b16 %v64
    %v92 = vpack.c.b16 %v91, %v90
    %v110 = vunpack.c.l.b16 %v65
    %v111 = vunpack.c.l.b16 %v66
    %v112 = vunpack.c.l.b16 %v67
    %v113 = vunpack.c.l.b16 %v68
    %v114 = vunpack.c.l.b16 %v69
    %v115 = vunpack.c.l.b16 %v70
    %v116 = vunpack.c.l.b16 %v71
    %v117 = vunpack.c.l.b16 %v72
    %v118 = vunpack.c.l.b16 %v73
    %v119 = vunpack.c.l.b16 %v74
    %v120 = vunpack.c.l.b16 %v75
    %v121 = vunpack.c.l.b16 %v76
    %v122 = vunpack.c.l.b16 %v77
    %v123 = vunpack.c.l.b16 %v78
    %v124 = vunpack.c.l.b16 %v79
    %v125 = vunpack.c.l.b16 %v80
    %v126 = vpack.c.b16 %v111, %v110
    %v127 = vpack.c.b16 %v113, %v112
    %v128 = vpack.c.b16 %v115, %v114
    %v129 = vpack.c.b16 %v117, %v116
    %v130 = vpack.c.b16 %v119, %v118
    %v131 = vpack.c.b16 %v121, %v120
    %v132 = vpack.c.b16 %v123, %v122
    %v133 = vpack.c.b16 %v125, %v124
    %142 = vmatprep.subr.bf16.mxu0 0
    %143 = vmatpush1.bf16.msra.mxu0 %v126
    %144 = vmatprep.subr.bf16.mxu0 0
    %145 = vmatpush1.bf16.msra.mxu0 %v127
    %146 = vmatprep.subr.bf16.mxu0 0
    %147 = vmatpush1.bf16.msra.mxu0 %v128
    %148 = vmatprep.subr.bf16.mxu0 0
    %149 = vmatpush1.bf16.msra.mxu0 %v129
    %150 = vmatprep.subr.bf16.mxu0 0
    %151 = vmatpush1.bf16.msra.mxu0 %v130
    %152 = vmatprep.subr.bf16.mxu0 0
    %153 = vmatpush1.bf16.msra.mxu0 %v131
    %154 = vmatprep.subr.bf16.mxu0 0
    %155 = vmatpush1.bf16.msra.mxu0 %v132
    %156 = vmatprep.subr.bf16.mxu0 0
    %157 = vmatpush1.bf16.msra.mxu0 %v133
    %158 = vmatprep.subr.bf16.mxu0 0
    %159 = vmatpush1.bf16.msra.mxu0 0
    %160 = vmatprep.subr.bf16.mxu0 0
    %161 = vmatpush1.bf16.msra.mxu0 0
    %162 = vmatprep.subr.bf16.mxu0 0
    %163 = vmatpush1.bf16.msra.mxu0 0
    %164 = vmatprep.subr.bf16.mxu0 0
    %165 = vmatpush1.bf16.msra.mxu0 0
    %166 = vmatprep.subr.bf16.mxu0 0
    %167 = vmatpush1.bf16.msra.mxu0 0
    %168 = vmatprep.subr.bf16.mxu0 0
    %169 = vmatpush1.bf16.msra.mxu0 0
    %170 = vmatprep.subr.bf16.mxu0 0
    %171 = vmatpush1.bf16.msra.mxu0 0
    %172 = vmatprep.subr.bf16.mxu0 0
    %173 = vmatpush1.bf16.msra.mxu0 0
    %174 = vmatprep.mubr.bf16.mxu0 0
    %175 = vmatmul.mubr.bf16.gmra.mrb[0].mxu0 %v92
    %v176 = vpop.f32.mrb[0].mxu0
    %v177 = vadd.f32 %v86, %v176
    %v178 = vpop.f32.mrb[0].mxu0
    %v179 = vpop.f32.mrb[0].mxu0
    %v180 = vadd.f32 %v86, %v179
    %v181 = vpop.f32.mrb[0].mxu0
    %182 = vdwg.mxu0
    %v183 = vmul.f32 %v177, 0.5
    %v184 = vmul.f32 %v180, 0.5
    %v185 = vmul.f32 %v177, 0.70710677
    %v186 = vmul.f32 %v180, 0.70710677
    %v187 = verf.f32.pop %v185
    %v188 = verf.f32.pop %v186
    %v189 = vadd.f32 %v187, 1.0
    %v190 = vadd.f32 %v188, 1.0
    %v191 = vmul.f32 %v183, %v189
    %v192 = vmul.f32 %v184, %v190
    %v193 = vpack.c.bf16 %v192, %v191
    %v194 = vld [vmem:[#allocation7] sm:$0xf]
    %v195 = vld [vmem:[#allocation7 + $0x4] sm:$0xf]
    %v196 = vld [vmem:[#allocation7 + $0x8] sm:$0xf]
    %v197 = vld [vmem:[#allocation7 + $0xc] sm:$0xf]
    %v198 = vld [vmem:[#allocation7 + $0x10] sm:$0xf]
    %v199 = vld [vmem:[#allocation7 + $0x14] sm:$0xf]
    %v200 = vld [vmem:[#allocation7 + $0x18] sm:$0xf]
    %v201 = vld [vmem:[#allocation7 + $0x1c] sm:$0xf]
    %v202 = vld [vmem:[#allocation7 + $0x20] sm:$0xf]
    %v203 = vld [vmem:[#allocation7 + $0x24] sm:$0xf]
    %v204 = vld [vmem:[#allocation7 + $0x28] sm:$0xf]
    %v205 = vld [vmem:[#allocation7 + $0x2c] sm:$0xf]
    %v206 = vld [vmem:[#allocation7 + $0x30] sm:$0xf]
    %v207 = vld [vmem:[#allocation7 + $0x34] sm:$0xf]
    %v208 = vld [vmem:[#allocation7 + $0x38] sm:$0xf]
    %v209 = vld [vmem:[#allocation7 + $0x3c] sm:$0xf]
    %v210 = vld [vmem:[%s4] sm:$0x1]
    %v212 = vlaneseq
    %v213 = vshrl.u32 %v212, 7
    %v214 = vsub.s32 0, %v213
    %v215 = vrot.slane %v210, %v214
    %v233 = vunpack.c.l.b16 %v194
    %v234 = vunpack.c.l.b16 %v195
    %v235 = vunpack.c.l.b16 %v196
    %v236 = vunpack.c.l.b16 %v197
    %v237 = vunpack.c.l.b16 %v198
    %v238 = vunpack.c.l.b16 %v199
    %v239 = vunpack.c.l.b16 %v200
    %v240 = vunpack.c.l.b16 %v201
    %v241 = vunpack.c.l.b16 %v202
    %v242 = vunpack.c.l.b16 %v203
    %v243 = vunpack.c.l.b16 %v204
    %v244 = vunpack.c.l.b16 %v205
    %v245 = vunpack.c.l.b16 %v206
    %v246 = vunpack.c.l.b16 %v207
    %v247 = vunpack.c.l.b16 %v208
    %v248 = vunpack.c.l.b16 %v209
    %v249 = vpack.c.b16 %v234, %v233
    %v250 = vpack.c.b16 %v236, %v235
    %v251 = vpack.c.b16 %v238, %v237
    %v252 = vpack.c.b16 %v240, %v239
    %v253 = vpack.c.b16 %v242, %v241
    %v254 = vpack.c.b16 %v244, %v243
    %v255 = vpack.c.b16 %v246, %v245
    %v256 = vpack.c.b16 %v248, %v247
    %265 = vmatprep.subr.bf16.mxu0 0
    %266 = vmatpush1.bf16.msra.mxu0 %v249
    %267 = vmatprep.subr.bf16.mxu0 0
    %268 = vmatpush1.bf16.msra.mxu0 %v250
    %269 = vmatprep.subr.bf16.mxu0 0
    %270 = vmatpush1.bf16.msra.mxu0 %v251
    %271 = vmatprep.subr.bf16.mxu0 0
    %272 = vmatpush1.bf16.msra.mxu0 %v252
    %273 = vmatprep.subr.bf16.mxu0 0
    %274 = vmatpush1.bf16.msra.mxu0 %v253
    %275 = vmatprep.subr.bf16.mxu0 0
    %276 = vmatpush1.bf16.msra.mxu0 %v254
    %277 = vmatprep.subr.bf16.mxu0 0
    %278 = vmatpush1.bf16.msra.mxu0 %v255
    %279 = vmatprep.subr.bf16.mxu0 0
    %280 = vmatpush1.bf16.msra.mxu0 %v256
    %281 = vmatprep.subr.bf16.mxu0 0
    %282 = vmatpush1.bf16.msra.mxu0 0
    %283 = vmatprep.subr.bf16.mxu0 0
    %284 = vmatpush1.bf16.msra.mxu0 0
    %285 = vmatprep.subr.bf16.mxu0 0
    %286 = vmatpush1.bf16.msra.mxu0 0
    %287 = vmatprep.subr.bf16.mxu0 0
    %288 = vmatpush1.bf16.msra.mxu0 0
    %289 = vmatprep.subr.bf16.mxu0 0
    %290 = vmatpush1.bf16.msra.mxu0 0
    %291 = vmatprep.subr.bf16.mxu0 0
    %292 = vmatpush1.bf16.msra.mxu0 0
    %293 = vmatprep.subr.bf16.mxu0 0
    %294 = vmatpush1.bf16.msra.mxu0 0
    %295 = vmatprep.subr.bf16.mxu0 0
    %296 = vmatpush1.bf16.msra.mxu0 0
    %297 = vmatprep.mubr.bf16.mxu0 0
    %298 = vmatmul.mubr.bf16.gmra.mrb[0].mxu0 %v193
    %v299 = vpop.f32.mrb[0].mxu0
    %v300 = vadd.f32 %v215, %v299
    %v301 = vpop.f32.mrb[0].mxu0
    %v302 = vpop.f32.mrb[0].mxu0
    %v303 = vadd.f32 %v215, %v302
    %v304 = vpop.f32.mrb[0].mxu0
    %305 = vdwg.mxu0
    %306 = vst [vmem:[#allocation8] sm:$0xff] %v300
    %307 = vst [vmem:[#allocation8 + $0x8] sm:$0xff] %v303
    // Predicated region
    $region34: #{tpu_custom_call.1} parent=1 // pred_check
      _
    $region35: #{tpu_custom_call.1} parent=1 // pred_check_branch
      %309 = sbr.rel (0) target = $region37
    $region36: #{tpu_custom_call.1} parent=1 // pred_region
      %s311 = ssub.s32 256, 256
      %312 = vsyncadd [#allocation4], %s311
      %s313 = sshll.u32 [#allocation8], 4
      %s314 = int_to_ptr.vmem [resolvable:$true] %s313
      %319 = dma.vmem_to_hbm [thread:$0]  %s314, 256, %s5, [#allocation4], 128, 128, 8
    $region37: #{tpu_custom_call.1} parent=1 // pred_fallthru
      _
    // Predicated region
    $region38: #{tpu_custom_call.1} parent=1 // pred_check
      _
    $region39: #{tpu_custom_call.1} parent=1 // pred_check_branch
      %321 = sbr.rel (0) target = $region41
    $region40: #{tpu_custom_call.1} parent=1 // pred_region
      %322 = dma.done [#allocation4], 256
    $region41: #{tpu_custom_call.1} parent=1 // pred_fallthru
      _
    %323 = vsyncpa [#allocation3], 1
    %324 = vsyncpa [#allocation6], 1
    %325 = vsyncpa [#allocation4], 1

</llo_original>
